<compile_context>
chip_gen: v7x
topology: tpu7x:2x2x1
jax: 0.10.0
libtpu: 0.0.40
codegen_flags: <defaults>
</compile_context>

<pallas_src>
import jax
import jax.numpy as jnp
from jax.experimental import pallas as pl
from jax.experimental.pallas import tpu as pltpu


def skconv_kernel(x_ref, y_ref, w1b_ref, bns_ref, bnb_ref, w2b_ref, o_ref):
    # Block shapes:
    #   x_ref / y_ref / o_ref : (R, HW)        R = bt*C rows of (batch, channel)
    #   w1b_ref               : (bt*d, R)      block-diag fc1 weight, 1/HW folded
    #   bns_ref / bnb_ref     : (bt*d, 1)      folded eval-mode BN scale / shift
    #   w2b_ref               : (2R, bt*d)     block-diag fc2 weight, rows
    #                                          ordered [branch-0 ; branch-1]
    x = x_ref[...]                                   # (R, HW)
    y = y_ref[...]                                   # (R, HW)
    U = x + y                                        # branch sum

    # Global average pool: lane-axis reduce (1/HW is folded into w1b).
    s = jnp.sum(U, axis=-1, keepdims=True)           # (R, 1)

    # fc1 (1x1 conv) + BN (eval, folded) + ReLU — one MXU pass for all bt
    # batch elements in this block.
    z = jnp.dot(w1b_ref[...], s, preferred_element_type=jnp.float32)   # (bt*d, 1)
    z = jnp.maximum(z * bns_ref[...] + bnb_ref[...], 0.0)

    # fc2 (1x1 conv) — one MXU pass; rows already grouped per branch and
    # aligned with the block's (batch, channel) row order.
    ab = jnp.dot(w2b_ref[...], z, preferred_element_type=jnp.float32)  # (2R, 1)

    R = x.shape[0]
    a0 = ab[:R]                                      # branch-0 logits (R, 1)
    a1 = ab[R:]                                      # branch-1 logits (R, 1)

    # 2-way softmax == sigmoid of the logit difference (single exp on EUP).
    att0 = 1.0 / (1.0 + jnp.exp(a1 - a0))            # (R, 1)
    att1 = 1.0 - att0

    # V = att0 * x + att1 * y  (broadcast (R,1) over lanes).
    o_ref[...] = (att0 * x + att1 * y).astype(o_ref.dtype)


def _pick_batch_tile(B, C):
    """Smallest divisor bt of B with bt*C a multiple of 8 (full sublanes),
    keeping as many grid steps as possible; fall back to the full batch."""
    divisors = [bt for bt in range(1, B + 1) if B % bt == 0]
    aligned = [bt for bt in divisors if (bt * C) % 8 == 0]
    return aligned[0] if aligned else B


def skconv_pallas(x, y, w1, bn_scale, bn_shift, w2):
    B, C, H, W = x.shape
    HW = H * W
    d = w1.shape[0]
    M = w2.shape[0] // C
    assert M == 2, "forward() fuses exactly two branches (x, y)"
    assert w2.shape == (M * C, d)

    bt = _pick_batch_tile(B, C)          # batch elements per block
    R = bt * C                           # rows per streamed block
    grid = (B // bt,)
    # NOTE(v7x): with B=2, C=4 the whole batch packs into one full-vreg block
    # (grid=1). For larger B the grid keeps >=2 parallel steps automatically.

    xr = x.reshape(B * C, HW)
    yr = y.reshape(B * C, HW)

    # Host-side weight packing (tiny, trace-time):
    eye = jnp.eye(bt, dtype=jnp.float32)
    # fc1 block-diagonal over bt batch elements, 1/HW pooling factor folded in.
    w1_big = jnp.kron(eye, w1.astype(jnp.float32)) * (1.0 / HW)        # (bt*d, R)
    bns_big = jnp.tile(bn_scale.astype(jnp.float32), bt).reshape(bt * d, 1)
    bnb_big = jnp.tile(bn_shift.astype(jnp.float32), bt).reshape(bt * d, 1)
    # fc2 block-diagonal, rows re-ordered: first R rows = branch-0 logits,
    # last R rows = branch-1 logits, each aligned with (batch, channel) rows.
    w2_big = jnp.concatenate(
        [jnp.kron(eye, w2[:C].astype(jnp.float32)),
         jnp.kron(eye, w2[C:].astype(jnp.float32))], axis=0)           # (2R, bt*d)

    out = pl.pallas_call(
        skconv_kernel,
        out_shape=jax.ShapeDtypeStruct((B * C, HW), x.dtype),
        grid_spec=pltpu.PrefetchScalarGridSpec(
            num_scalar_prefetch=0,
            grid=grid,
            in_specs=[
                pl.BlockSpec((R, HW), lambda i: (i, 0)),
                pl.BlockSpec((R, HW), lambda i: (i, 0)),
                # Constant-index weight blocks: stay VMEM-resident across steps.
                pl.BlockSpec((bt * d, R), lambda i: (0, 0)),
                pl.BlockSpec((bt * d, 1), lambda i: (0, 0)),
                pl.BlockSpec((bt * d, 1), lambda i: (0, 0)),
                pl.BlockSpec((2 * R, bt * d), lambda i: (0, 0)),
            ],
            out_specs=pl.BlockSpec((R, HW), lambda i: (i, 0)),
        ),
        compiler_params=pltpu.CompilerParams(
            dimension_semantics=("parallel",)),
    )(xr, yr, w1_big, bns_big, bnb_big, w2_big)
    return out.reshape(B, C, H, W)


def skconv_ref(x, y, w1, bn_scale, bn_shift, w2):
    """Pure-JAX reference mirroring the PyTorch forward (eval-mode BN)."""
    B, C, H, W = x.shape
    U = x + y
    s = U.mean(axis=(2, 3))                                  # (B, C)
    z = s @ w1.T                                             # (B, d)
    z = jnp.maximum(z * bn_scale + bn_shift, 0.0)
    ab = (z @ w2.T).reshape(B, 2, C)
    a = jax.nn.softmax(ab, axis=1)
    a0 = a[:, 0][:, :, None, None]
    a1 = a[:, 1][:, :, None, None]
    return a0 * x + a1 * y


if __name__ == "__main__":
    # Module config: in_channels = out_channels = 4, M=2, r=16, L=32
    # => d = max(4 // 16, 32) = 32
    B, C, H, W = 2, 4, 16, 16
    M, r, L = 2, 16, 32
    d = max(C // r, L)

    key = jax.random.PRNGKey(0)
    kx, ky, kw1, kg, kb, km, kv, kw2 = jax.random.split(key, 8)

    x = jax.random.normal(kx, (B, C, H, W), dtype=jnp.float32)
    y = jax.random.normal(ky, (B, C, H, W), dtype=jnp.float32)

    # fc1: Conv2d(C, d, 1, bias=False) -> weight (d, C)
    w1 = jax.random.normal(kw1, (d, C), dtype=jnp.float32) * 0.1
    # BatchNorm2d(d): deterministic eval-mode statistics, folded to scale/shift.
    gamma = 1.0 + 0.1 * jax.random.normal(kg, (d,), dtype=jnp.float32)
    beta = 0.1 * jax.random.normal(kb, (d,), dtype=jnp.float32)
    run_mean = 0.1 * jax.random.normal(km, (d,), dtype=jnp.float32)
    run_var = 1.0 + 0.1 * jnp.abs(jax.random.normal(kv, (d,), dtype=jnp.float32))
    eps = 1e-5
    inv_std = gamma / jnp.sqrt(run_var + eps)
    bn_scale = inv_std                                   # (d,)
    bn_shift = beta - run_mean * inv_std                 # (d,)
    # fc2: Conv2d(d, C*M, 1, bias=False) -> weight (C*M, d)
    w2 = jax.random.normal(kw2, (M * C, d), dtype=jnp.float32) * 0.1

    out = skconv_pallas(x, y, w1, bn_scale, bn_shift, w2)
    out = jax.block_until_ready(out)

    ref = skconv_ref(x, y, w1, bn_scale, bn_shift, w2)
    assert out.shape == (B, C, H, W)
    assert jnp.allclose(out, ref, atol=1e-5, rtol=1e-5), "mismatch vs reference"

    print("KERNEL_OK")
</pallas_src>

<mosaic_0001>
module attributes {stable_mosaic.version = 11 : i64} {
  func.func @skconv_kernel(%arg0: i32, %arg1: memref<8x256xf32, #tpu.memory_space<vmem>>, %arg2: memref<8x256xf32, #tpu.memory_space<vmem>>, %arg3: memref<64x8xf32, #tpu.memory_space<vmem>>, %arg4: memref<64x1xf32, #tpu.memory_space<vmem>>, %arg5: memref<64x1xf32, #tpu.memory_space<vmem>>, %arg6: memref<16x64xf32, #tpu.memory_space<vmem>>, %arg7: memref<8x256xf32, #tpu.memory_space<vmem>>) attributes {dimension_semantics = [#tpu.dimension_semantics<parallel>], iteration_bounds = array<i64: 1>, scalar_prefetch = 0 : i64, scratch_operands = 0 : i64, tpu.core_type = #tpu.core_type<tc>, window_params = [{transform_indices = @transform_0, window_bounds = array<i64: 8, 256>}, {transform_indices = @transform_1, window_bounds = array<i64: 8, 256>}, {pipeline_mode = #tpu.pipeline_mode<synchronous>, transform_indices = @transform_2, window_bounds = array<i64: 64, 8>}, {pipeline_mode = #tpu.pipeline_mode<synchronous>, transform_indices = @transform_3, window_bounds = array<i64: 64, 1>}, {pipeline_mode = #tpu.pipeline_mode<synchronous>, transform_indices = @transform_4, window_bounds = array<i64: 64, 1>}, {pipeline_mode = #tpu.pipeline_mode<synchronous>, transform_indices = @transform_5, window_bounds = array<i64: 16, 64>}, {transform_indices = @transform_6, window_bounds = array<i64: 8, 256>}]} {
    %c0 = arith.constant 0 : index
    %c0_0 = arith.constant 0 : index
    %0 = vector.load %arg1[%c0, %c0_0] : memref<8x256xf32, #tpu.memory_space<vmem>>, vector<8x256xf32>
    %c0_1 = arith.constant 0 : index
    %c0_2 = arith.constant 0 : index
    %1 = vector.load %arg2[%c0_1, %c0_2] : memref<8x256xf32, #tpu.memory_space<vmem>>, vector<8x256xf32>
    %2 = arith.addf %0, %1 : vector<8x256xf32>
    %cst = arith.constant dense<0.000000e+00> : vector<8xf32>
    %3 = vector.multi_reduction <add>, %2, %cst [1] : vector<8x256xf32> to vector<8xf32>
    %4 = vector.shape_cast %3 : vector<8xf32> to vector<8x1xf32>
    %c0_3 = arith.constant 0 : index
    %c0_4 = arith.constant 0 : index
    %5 = vector.load %arg3[%c0_3, %c0_4] : memref<64x8xf32, #tpu.memory_space<vmem>>, vector<64x8xf32>
    %cst_5 = arith.constant dense<0.000000e+00> : vector<64x1xf32>
    %6 = tpu.matmul %5, %4, %cst_5 {dimension_numbers = #tpu.dot_dimension_numbers<[1], [0], [0], [1], [0, 0, 1, 1], [], []>} : vector<64x8xf32>, vector<8x1xf32>, vector<64x1xf32> -> vector<64x1xf32>
    %c0_6 = arith.constant 0 : index
    %c0_7 = arith.constant 0 : index
    %7 = vector.load %arg4[%c0_6, %c0_7] : memref<64x1xf32, #tpu.memory_space<vmem>>, vector<64x1xf32>
    %8 = arith.mulf %6, %7 : vector<64x1xf32>
    %c0_8 = arith.constant 0 : index
    %c0_9 = arith.constant 0 : index
    %9 = vector.load %arg5[%c0_8, %c0_9] : memref<64x1xf32, #tpu.memory_space<vmem>>, vector<64x1xf32>
    %10 = arith.addf %8, %9 : vector<64x1xf32>
    %cst_10 = arith.constant 0.000000e+00 : f32
    %11 = vector.broadcast %cst_10 : f32 to vector<64x1xf32>
    %12 = arith.maximumf %10, %11 : vector<64x1xf32>
    %c0_11 = arith.constant 0 : index
    %c0_12 = arith.constant 0 : index
    %13 = vector.load %arg6[%c0_11, %c0_12] : memref<16x64xf32, #tpu.memory_space<vmem>>, vector<16x64xf32>
    %cst_13 = arith.constant dense<0.000000e+00> : vector<16x1xf32>
    %14 = tpu.matmul %13, %12, %cst_13 {dimension_numbers = #tpu.dot_dimension_numbers<[1], [0], [0], [1], [0, 0, 1, 1], [], []>} : vector<16x64xf32>, vector<64x1xf32>, vector<16x1xf32> -> vector<16x1xf32>
    %15 = vector.extract_strided_slice %14 {offsets = [0, 0], sizes = [8, 1], strides = [1, 1]} : vector<16x1xf32> to vector<8x1xf32>
    %16 = vector.extract_strided_slice %14 {offsets = [8, 0], sizes = [8, 1], strides = [1, 1]} : vector<16x1xf32> to vector<8x1xf32>
    %17 = arith.subf %16, %15 : vector<8x1xf32>
    %18 = math.exp %17 : vector<8x1xf32>
    %cst_14 = arith.constant 1.000000e+00 : f32
    %19 = vector.broadcast %cst_14 : f32 to vector<8x1xf32>
    %20 = arith.addf %19, %18 : vector<8x1xf32>
    %cst_15 = arith.constant 1.000000e+00 : f32
    %21 = vector.broadcast %cst_15 : f32 to vector<8x1xf32>
    %22 = arith.divf %21, %20 : vector<8x1xf32>
    %cst_16 = arith.constant 1.000000e+00 : f32
    %23 = vector.broadcast %cst_16 : f32 to vector<8x1xf32>
    %24 = arith.subf %23, %22 : vector<8x1xf32>
    %25 = vector.broadcast %22 : vector<8x1xf32> to vector<8x256xf32>
    %26 = arith.mulf %25, %0 : vector<8x256xf32>
    %27 = vector.broadcast %24 : vector<8x1xf32> to vector<8x256xf32>
    %28 = arith.mulf %27, %1 : vector<8x256xf32>
    %29 = arith.addf %26, %28 : vector<8x256xf32>
    %c0_17 = arith.constant 0 : index
    %c0_18 = arith.constant 0 : index
    %30 = vector.load %arg7[%c0_17, %c0_18] : memref<8x256xf32, #tpu.memory_space<vmem>>, vector<8x256xf32>
    tpu.vector_store %arg7[%c0_17, %c0_18], %29 {strides = array<i32>} : memref<8x256xf32, #tpu.memory_space<vmem>>, vector<8x256xf32>,
    return
  }
  func.func @transform_0(%arg0: i32) -> (i32, i32) {
    %c0_i32 = arith.constant 0 : i32
    %c0_i32_0 = arith.constant 0 : i32
    return %arg0, %c0_i32 : i32, i32
  }
  func.func @transform_1(%arg0: i32) -> (i32, i32) {
    %c0_i32 = arith.constant 0 : i32
    %c0_i32_0 = arith.constant 0 : i32
    return %arg0, %c0_i32 : i32, i32
  }
  func.func @transform_2(%arg0: i32) -> (i32, i32) {
    %c0_i32 = arith.constant 0 : i32
    %c0_i32_0 = arith.constant 0 : i32
    %c0_i32_1 = arith.constant 0 : i32
    return %c0_i32, %c0_i32_0 : i32, i32
  }
  func.func @transform_3(%arg0: i32) -> (i32, i32) {
    %c0_i32 = arith.constant 0 : i32
    %c0_i32_0 = arith.constant 0 : i32
    %c0_i32_1 = arith.constant 0 : i32
    return %c0_i32, %c0_i32_0 : i32, i32
  }
  func.func @transform_4(%arg0: i32) -> (i32, i32) {
    %c0_i32 = arith.constant 0 : i32
    %c0_i32_0 = arith.constant 0 : i32
    %c0_i32_1 = arith.constant 0 : i32
    return %c0_i32, %c0_i32_0 : i32, i32
  }
  func.func @transform_5(%arg0: i32) -> (i32, i32) {
    %c0_i32 = arith.constant 0 : i32
    %c0_i32_0 = arith.constant 0 : i32
    %c0_i32_1 = arith.constant 0 : i32
    return %c0_i32, %c0_i32_0 : i32, i32
  }
  func.func @transform_6(%arg0: i32) -> (i32, i32) {
    %c0_i32 = arith.constant 0 : i32
    %c0_i32_0 = arith.constant 0 : i32
    return %arg0, %c0_i32 : i32, i32
  }
}

</mosaic_0001>

<llo_original>
// kernel: tpu_custom_call.1
$region0: #{tpu_custom_call.1}
  #allocation0 [shape = 'u32[]', space=smem, size = 0x4, offset = 0x4, fixed_abs, tag = 'smem constant byte address 0x4 - core index']
  #allocation1 [shape = 'u32[144,128]{1,0:T(1,128)}', space=vmem, size = 0x12000, scoped, tag = 'internal scratch']
  %s0 = inlined_call_operand.vmem [shape: f32[8,256], index: 0, kind: input, shape index: {}]
  %s1 = inlined_call_operand.vmem [shape: f32[8,256], index: 1, kind: input, shape index: {}]
  %s2 = inlined_call_operand.vmem [shape: f32[64,8], index: 2, kind: input, shape index: {}]
  %s3 = inlined_call_operand.vmem [shape: f32[64,1], index: 3, kind: input, shape index: {}]
  %s4 = inlined_call_operand.vmem [shape: f32[64,1], index: 4, kind: input, shape index: {}]
  %s5 = inlined_call_operand.vmem [shape: f32[16,64], index: 5, kind: input, shape index: {}]
  %s6 = inlined_call_operand.hbm [shape: f32[8,256], index: 6, kind: output, shape index: {}]
  %s7 = sld [smem:[#allocation0]]
  $region34: #{tpu_custom_call.1} parent=0
    _
  %s9 = ssub.s32 1, %s7
  %s10 = scalar_select 0, %s9, %s7
  $region1: #{tpu_custom_call.1} parent=0
    #allocation2 [shape = 'u8[8192]{0}', space=vmem, size = 0x2000, scoped, tag = 'output window, operand 0, single buffered']
    #allocation3 [shape = 's32[1]{0}', space=sflag, size = 0x4, scoped, tag = 'scoped memory for tpu_custom_call.1']
    %11 = vsyncpa [#allocation3], 0
    // Predicated region
    $region2: #{tpu_custom_call.1} parent=1 // pred_check
      _
    $region3: #{tpu_custom_call.1} parent=1 // pred_check_branch
      %13 = sbr.rel (0) target = $region5
    $region4: #{tpu_custom_call.1} parent=1 // pred_region
      _
    $region5: #{tpu_custom_call.1} parent=1 // pred_fallthru
      _
    // Predicated region
    $region6: #{tpu_custom_call.1} parent=1 // pred_check
      _
    $region7: #{tpu_custom_call.1} parent=1 // pred_check_branch
      %15 = sbr.rel (0) target = $region9
    $region8: #{tpu_custom_call.1} parent=1 // pred_region
      _
    $region9: #{tpu_custom_call.1} parent=1 // pred_fallthru
      _
    // Predicated region
    $region10: #{tpu_custom_call.1} parent=1 // pred_check
      _
    $region11: #{tpu_custom_call.1} parent=1 // pred_check_branch
      %17 = sbr.rel (0) target = $region13
    $region12: #{tpu_custom_call.1} parent=1 // pred_region
      _
    $region13: #{tpu_custom_call.1} parent=1 // pred_fallthru
      _
    // Predicated region
    $region14: #{tpu_custom_call.1} parent=1 // pred_check
      _
    $region15: #{tpu_custom_call.1} parent=1 // pred_check_branch
      %19 = sbr.rel (0) target = $region17
    $region16: #{tpu_custom_call.1} parent=1 // pred_region
      _
    $region17: #{tpu_custom_call.1} parent=1 // pred_fallthru
      _
    // Predicated region
    $region18: #{tpu_custom_call.1} parent=1 // pred_check
      _
    $region19: #{tpu_custom_call.1} parent=1 // pred_check_branch
      %21 = sbr.rel (0) target = $region21
    $region20: #{tpu_custom_call.1} parent=1 // pred_region
      _
    $region21: #{tpu_custom_call.1} parent=1 // pred_fallthru
      _
    // Predicated region
    $region22: #{tpu_custom_call.1} parent=1 // pred_check
      _
    $region23: #{tpu_custom_call.1} parent=1 // pred_check_branch
      %23 = sbr.rel (0) target = $region25
    $region24: #{tpu_custom_call.1} parent=1 // pred_region
      _
    $region25: #{tpu_custom_call.1} parent=1 // pred_fallthru
      _
    %v24 = vld [vmem:[%s0] sm:$0xff]
    %v25 = vld [vmem:[%s0 + $0x8] sm:$0xff]
    %v26 = vld [vmem:[%s1] sm:$0xff]
    %v27 = vld [vmem:[%s1 + $0x8] sm:$0xff]
    %v28 = vadd.f32 %v24, %v26
    %v29 = vadd.f32 %v25, %v27
    %v30 = vadd.f32 %v28, %v29
    %31 = vadd.xlane.f32.xlu0 %v30
    %v32 = vpop.xlane.xlu0 %31
    %v33 = vld [vmem:[%s2] sm:$0xff]
    %v34 = vld [vmem:[%s2 + $0x8] sm:$0xff]
    %v35 = vld [vmem:[%s2 + $0x10] sm:$0xff]
    %v36 = vld [vmem:[%s2 + $0x18] sm:$0xff]
    %v37 = vld [vmem:[%s2 + $0x20] sm:$0xff]
    %v38 = vld [vmem:[%s2 + $0x28] sm:$0xff]
    %v39 = vld [vmem:[%s2 + $0x30] sm:$0xff]
    %v40 = vld [vmem:[%s2 + $0x38] sm:$0xff]
    %vm41 = vcmask 64512
    %v43 = vsel %vm41, %v33, 0
    %v46 = vsel %vm41, %v34, 0
    %v49 = vsel %vm41, %v35, 0
    %v52 = vsel %vm41, %v36, 0
    %v55 = vsel %vm41, %v37, 0
    %v58 = vsel %vm41, %v38, 0
    %v61 = vsel %vm41, %v39, 0
    %v64 = vsel %vm41, %v40, 0
    %66 = vmatprep.subr.mxu0 0.0
    %67 = vmatpush1.msra.mxu0 %v32
    %68 = vmatprep.subr.mxu0 0.0
    %69 = vmatpush1.msra.mxu0 0.0
    %70 = vmatprep.subr.mxu0 0.0
    %71 = vmatpush1.msra.mxu0 0.0
    %72 = vmatprep.subr.mxu0 0.0
    %73 = vmatpush1.msra.mxu0 0.0
    %74 = vmatprep.subr.mxu0 0.0
    %75 = vmatpush1.msra.mxu0 0.0
    %76 = vmatprep.subr.mxu0 0.0
    %77 = vmatpush1.msra.mxu0 0.0
    %78 = vmatprep.subr.mxu0 0.0
    %79 = vmatpush1.msra.mxu0 0.0
    %80 = vmatprep.subr.mxu0 0.0
    %81 = vmatpush1.msra.mxu0 0.0
    %82 = vmatprep.subr.mxu0 0.0
    %83 = vmatpush1.msra.mxu0 0.0
    %84 = vmatprep.subr.mxu0 0.0
    %85 = vmatpush1.msra.mxu0 0.0
    %86 = vmatprep.subr.mxu0 0.0
    %87 = vmatpush1.msra.mxu0 0.0
    %88 = vmatprep.subr.mxu0 0.0
    %89 = vmatpush1.msra.mxu0 0.0
    %90 = vmatprep.subr.mxu0 0.0
    %91 = vmatpush1.msra.mxu0 0.0
    %92 = vmatprep.subr.mxu0 0.0
    %93 = vmatpush1.msra.mxu0 0.0
    %94 = vmatprep.subr.mxu0 0.0
    %95 = vmatpush1.msra.mxu0 0.0
    %96 = vmatprep.subr.mxu0 0.0
    %97 = vmatpush1.msra.mxu0 0.0
    %98 = vmatprep.subr.mxu0 0.0
    %99 = vmatpush1.msra.mxu0 0.0
    %100 = vmatprep.subr.mxu0 0.0
    %101 = vmatpush1.msra.mxu0 0.0
    %102 = vmatprep.subr.mxu0 0.0
    %103 = vmatpush1.msra.mxu0 0.0
    %104 = vmatprep.subr.mxu0 0.0
    %105 = vmatpush1.msra.mxu0 0.0
    %106 = vmatprep.subr.mxu0 0.0
    %107 = vmatpush1.msra.mxu0 0.0
    %108 = vmatprep.subr.mxu0 0.0
    %109 = vmatpush1.msra.mxu0 0.0
    %110 = vmatprep.subr.mxu0 0.0
    %111 = vmatpush1.msra.mxu0 0.0
    %112 = vmatprep.subr.mxu0 0.0
    %113 = vmatpush1.msra.mxu0 0.0
    %114 = vmatprep.subr.mxu0 0.0
    %115 = vmatpush1.msra.mxu0 0.0
    %116 = vmatprep.subr.mxu0 0.0
    %117 = vmatpush1.msra.mxu0 0.0
    %118 = vmatprep.subr.mxu0 0.0
    %119 = vmatpush1.msra.mxu0 0.0
    %120 = vmatprep.subr.mxu0 0.0
    %121 = vmatpush1.msra.mxu0 0.0
    %122 = vmatprep.subr.mxu0 0.0
    %123 = vmatpush1.msra.mxu0 0.0
    %124 = vmatprep.subr.mxu0 0.0
    %125 = vmatpush1.msra.mxu0 0.0
    %126 = vmatprep.subr.mxu0 0.0
    %127 = vmatpush1.msra.mxu0 0.0
    %128 = vmatprep.subr.mxu0 0.0
    %129 = vmatpush1.msra.mxu0 0.0
    %130 = vmatprep.mubr.f32.mxu0 0.0
    %131 = vmatmul.mubr.f32.gmra.mrb[0].mxu0 %v43
    %v132 = vpop.f32.mrb[0].mxu0
    %v133 = vadd.f32 0.0, %v132
    %v134 = vpop.f32.mrb[0].mxu0
    %135 = vmatprep.mubr.f32.mxu0 0.0
    %136 = vmatmul.mubr.f32.gmra.mrb[0].mxu0 %v46
    %v137 = vpop.f32.mrb[0].mxu0
    %v138 = vadd.f32 0.0, %v137
    %v139 = vpop.f32.mrb[0].mxu0
    %140 = vmatprep.mubr.f32.mxu0 0.0
    %141 = vmatmul.mubr.f32.gmra.mrb[0].mxu0 %v49
    %v142 = vpop.f32.mrb[0].mxu0
    %v143 = vadd.f32 0.0, %v142
    %v144 = vpop.f32.mrb[0].mxu0
    %145 = vmatprep.mubr.f32.mxu0 0.0
    %146 = vmatmul.mubr.f32.gmra.mrb[0].mxu0 %v52
    %v147 = vpop.f32.mrb[0].mxu0
    %v148 = vadd.f32 0.0, %v147
    %v149 = vpop.f32.mrb[0].mxu0
    %150 = vmatprep.mubr.f32.mxu0 0.0
    %151 = vmatmul.mubr.f32.gmra.mrb[0].mxu0 %v55
    %v152 = vpop.f32.mrb[0].mxu0
    %v153 = vadd.f32 0.0, %v152
    %v154 = vpop.f32.mrb[0].mxu0
    %155 = vmatprep.mubr.f32.mxu0 0.0
    %156 = vmatmul.mubr.f32.gmra.mrb[0].mxu0 %v58
    %v157 = vpop.f32.mrb[0].mxu0
    %v158 = vadd.f32 0.0, %v157
    %v159 = vpop.f32.mrb[0].mxu0
    %160 = vmatprep.mubr.f32.mxu0 0.0
    %161 = vmatmul.mubr.f32.gmra.mrb[0].mxu0 %v61
    %v162 = vpop.f32.mrb[0].mxu0
    %v163 = vadd.f32 0.0, %v162
    %v164 = vpop.f32.mrb[0].mxu0
    %165 = vmatprep.mubr.f32.mxu0 0.0
    %166 = vmatmul.mubr.f32.gmra.mrb[0].mxu0 %v64
    %v167 = vpop.f32.mrb[0].mxu0
    %v168 = vadd.f32 0.0, %v167
    %v169 = vpop.f32.mrb[0].mxu0
    %170 = vdwg.mxu0
    %v171 = vld [vmem:[%s3] sm:$0xff]
    %v172 = vld [vmem:[%s3 + $0x8] sm:$0xff]
    %v173 = vld [vmem:[%s3 + $0x10] sm:$0xff]
    %v174 = vld [vmem:[%s3 + $0x18] sm:$0xff]
    %v175 = vld [vmem:[%s3 + $0x20] sm:$0xff]
    %v176 = vld [vmem:[%s3 + $0x28] sm:$0xff]
    %v177 = vld [vmem:[%s3 + $0x30] sm:$0xff]
    %v178 = vld [vmem:[%s3 + $0x38] sm:$0xff]
    %v179 = vmul.f32 %v133, %v171
    %v180 = vmul.f32 %v138, %v172
    %v181 = vmul.f32 %v143, %v173
    %v182 = vmul.f32 %v148, %v174
    %v183 = vmul.f32 %v153, %v175
    %v184 = vmul.f32 %v158, %v176
    %v185 = vmul.f32 %v163, %v177
    %v186 = vmul.f32 %v168, %v178
    %v187 = vld [vmem:[%s4] sm:$0xff]
    %v188 = vld [vmem:[%s4 + $0x8] sm:$0xff]
    %v189 = vld [vmem:[%s4 + $0x10] sm:$0xff]
    %v190 = vld [vmem:[%s4 + $0x18] sm:$0xff]
    %v191 = vld [vmem:[%s4 + $0x20] sm:$0xff]
    %v192 = vld [vmem:[%s4 + $0x28] sm:$0xff]
    %v193 = vld [vmem:[%s4 + $0x30] sm:$0xff]
    %v194 = vld [vmem:[%s4 + $0x38] sm:$0xff]
    %v195 = vadd.f32 %v179, %v187
    %v196 = vadd.f32 %v180, %v188
    %v197 = vadd.f32 %v181, %v189
    %v198 = vadd.f32 %v182, %v190
    %v199 = vadd.f32 %v183, %v191
    %v200 = vadd.f32 %v184, %v192
    %v201 = vadd.f32 %v185, %v193
    %v202 = vadd.f32 %v186, %v194
    %v203 = vmax.f32 %v195, 0.0
    %v204 = vmax.f32 %v196, 0.0
    %v205 = vmax.f32 %v197, 0.0
    %v206 = vmax.f32 %v198, 0.0
    %v207 = vmax.f32 %v199, 0.0
    %v208 = vmax.f32 %v200, 0.0
    %v209 = vmax.f32 %v201, 0.0
    %v210 = vmax.f32 %v202, 0.0
    %v211 = vld [vmem:[%s5] sm:$0xff]
    %v212 = vld [vmem:[%s5 + $0x8] sm:$0xff]
    %vm213 = vcmask 523264
    %v215 = vsel %vm213, %v211, 0
    %v218 = vsel %vm213, %v212, 0
    %220 = vmatprep.subr.mxu0 0.0
    %221 = vmatpush1.msra.mxu0 %v203
    %222 = vmatprep.subr.mxu0 0.0
    %223 = vmatpush1.msra.mxu0 %v204
    %224 = vmatprep.subr.mxu0 0.0
    %225 = vmatpush1.msra.mxu0 %v205
    %226 = vmatprep.subr.mxu0 0.0
    %227 = vmatpush1.msra.mxu0 %v206
    %228 = vmatprep.subr.mxu0 0.0
    %229 = vmatpush1.msra.mxu0 %v207
    %230 = vmatprep.subr.mxu0 0.0
    %231 = vmatpush1.msra.mxu0 %v208
    %232 = vmatprep.subr.mxu0 0.0
    %233 = vmatpush1.msra.mxu0 %v209
    %234 = vmatprep.subr.mxu0 0.0
    %235 = vmatpush1.msra.mxu0 %v210
    %236 = vmatprep.subr.mxu0 0.0
    %237 = vmatpush1.msra.mxu0 0.0
    %238 = vmatprep.subr.mxu0 0.0
    %239 = vmatpush1.msra.mxu0 0.0
    %240 = vmatprep.subr.mxu0 0.0
    %241 = vmatpush1.msra.mxu0 0.0
    %242 = vmatprep.subr.mxu0 0.0
    %243 = vmatpush1.msra.mxu0 0.0
    %244 = vmatprep.subr.mxu0 0.0
    %245 = vmatpush1.msra.mxu0 0.0
    %246 = vmatprep.subr.mxu0 0.0
    %247 = vmatpush1.msra.mxu0 0.0
    %248 = vmatprep.subr.mxu0 0.0
    %249 = vmatpush1.msra.mxu0 0.0
    %250 = vmatprep.subr.mxu0 0.0
    %251 = vmatpush1.msra.mxu0 0.0
    %252 = vmatprep.subr.mxu0 0.0
    %253 = vmatpush1.msra.mxu0 0.0
    %254 = vmatprep.subr.mxu0 0.0
    %255 = vmatpush1.msra.mxu0 0.0
    %256 = vmatprep.subr.mxu0 0.0
    %257 = vmatpush1.msra.mxu0 0.0
    %258 = vmatprep.subr.mxu0 0.0
    %259 = vmatpush1.msra.mxu0 0.0
    %260 = vmatprep.subr.mxu0 0.0
    %261 = vmatpush1.msra.mxu0 0.0
    %262 = vmatprep.subr.mxu0 0.0
    %263 = vmatpush1.msra.mxu0 0.0
    %264 = vmatprep.subr.mxu0 0.0
    %265 = vmatpush1.msra.mxu0 0.0
    %266 = vmatprep.subr.mxu0 0.0
    %267 = vmatpush1.msra.mxu0 0.0
    %268 = vmatprep.subr.mxu0 0.0
    %269 = vmatpush1.msra.mxu0 0.0
    %270 = vmatprep.subr.mxu0 0.0
    %271 = vmatpush1.msra.mxu0 0.0
    %272 = vmatprep.subr.mxu0 0.0
    %273 = vmatpush1.msra.mxu0 0.0
    %274 = vmatprep.subr.mxu0 0.0
    %275 = vmatpush1.msra.mxu0 0.0
    %276 = vmatprep.subr.mxu0 0.0
    %277 = vmatpush1.msra.mxu0 0.0
    %278 = vmatprep.subr.mxu0 0.0
    %279 = vmatpush1.msra.mxu0 0.0
    %280 = vmatprep.subr.mxu0 0.0
    %281 = vmatpush1.msra.mxu0 0.0
    %282 = vmatprep.subr.mxu0 0.0
    %283 = vmatpush1.msra.mxu0 0.0
    %284 = vmatprep.mubr.f32.mxu0 0.0
    %285 = vmatmul.mubr.f32.gmra.mrb[0].mxu0 %v215
    %v286 = vpop.f32.mrb[0].mxu0
    %v287 = vadd.f32 0.0, %v286
    %v288 = vpop.f32.mrb[0].mxu0
    %289 = vmatprep.mubr.f32.mxu0 0.0
    %290 = vmatmul.mubr.f32.gmra.mrb[0].mxu0 %v218
    %v291 = vpop.f32.mrb[0].mxu0
    %v292 = vadd.f32 0.0, %v291
    %v293 = vpop.f32.mrb[0].mxu0
    %294 = vdwg.mxu0
    %v295 = vsub.f32 %v292, %v287
    %v296 = vmul.f32 %v295, 1.442695
    %v297 = vpow.pop %v296
    %v298 = vadd.f32 %v297, 1.0
    %v299 = vrcp.pop %v298
    %v300 = vmul.f32 1.0, %v299
    %v301 = vsub.f32 1.0, %v300
    %303 = vset.pattern.permute.xlu0 0
    %304 = vperm.xlu0 %303, %v300
    %v305 = vpop.permute.xlu0 %304
    %v307 = vmul.f32 %v305, %v24
    %v308 = vmul.f32 %v305, %v25
    %310 = vset.pattern.permute.xlu0 0
    %311 = vperm.xlu0 %310, %v301
    %v312 = vpop.permute.xlu0 %311
    %v314 = vmul.f32 %v312, %v26
    %v315 = vmul.f32 %v312, %v27
    %v316 = vadd.f32 %v307, %v314
    %v317 = vadd.f32 %v308, %v315
    %318 = vst [vmem:[#allocation2] sm:$0xff] %v316
    %319 = vst [vmem:[#allocation2 + $0x8] sm:$0xff] %v317
    // Predicated region
    $region26: #{tpu_custom_call.1} parent=1 // pred_check
      _
    $region27: #{tpu_custom_call.1} parent=1 // pred_check_branch
      %321 = sbr.rel (0) target = $region29
    $region28: #{tpu_custom_call.1} parent=1 // pred_region
      %s323 = ssub.s32 256, 256
      %324 = vsyncadd [#allocation3], %s323
      %s326 = sshll.u32 [#allocation2], 4
      %s327 = int_to_ptr.vmem [resolvable:$true] %s326
      %329 = dma.vmem_to_hbm [thread:$0]  %s327, 256, %s6, [#allocation3]
    $region29: #{tpu_custom_call.1} parent=1 // pred_fallthru
      _
    // Predicated region
    $region30: #{tpu_custom_call.1} parent=1 // pred_check
      _
    $region31: #{tpu_custom_call.1} parent=1 // pred_check_branch
      %331 = sbr.rel (0) target = $region33
    $region32: #{tpu_custom_call.1} parent=1 // pred_region
      %332 = dma.done [#allocation3], 256
    $region33: #{tpu_custom_call.1} parent=1 // pred_fallthru
      _
    %333 = vsyncpa [#allocation3], 1

</llo_original>
